<compile_context>
chip_gen: v7x
topology: tpu7x:2x2x1
jax: 0.10.0
libtpu: 0.0.40
codegen_flags: <defaults>
</compile_context>

<pallas_src>
import functools
import re

import jax
import jax.numpy as jnp
from jax.experimental import pallas as pl
from jax.experimental.pallas import tpu as pltpu


def _round_up(x, m):
    return ((x + m - 1) // m) * m


# ----------------------------- Pallas kernel -------------------------------- #
def _sent_embd_kernel(emb_ref, w_ref, b_ref, o_ref, *, words):
    # emb_ref: (tb*W, Dp) bf16 | w_ref: (Dp, tn) bf16 | b_ref: (1, tn) f32
    # o_ref:   (tb, tn)  f32
    h = jnp.dot(emb_ref[...], w_ref[...],
                preferred_element_type=jnp.float32)           # MXU bf16 -> f32 acc
    m, tn = h.shape
    # Word-max BEFORE bias + ReLU: bias is constant over the word axis and ReLU
    # is monotone, so relu(max_w(h) + b) == max_w(relu(h + b)) exactly.
    # words == 16 (module default) keeps this reshape sublane-aligned.
    hmax = jnp.max(h.reshape(m // words, words, tn), axis=1)  # (tb, tn)
    o_ref[...] = jnp.maximum(hmax + b_ref[...], 0.0)          # small VPU epilogue


# --------------------------- One-time parameter prep ------------------------ #
def prepare_params(emb_table, w1, b1):
    """Cast/pad the constant parameters ONCE (hoisted out of the call path).

    emb_table: [V, D] f32; w1: [D, O] (= Linear.weight.T); b1: [O]."""
    D = emb_table.shape[1]
    O = w1.shape[1]
    Dp = _round_up(D, 128)                       # lane-aligned K (e.g. 300 -> 384)
    Op = _round_up(O, 128)
    table_p = jnp.pad(emb_table.astype(jnp.bfloat16), ((0, 0), (0, Dp - D)))
    w1_p = jnp.pad(w1.astype(jnp.bfloat16), ((0, Dp - D), (0, Op - O)))
    b1_p = jnp.pad(b1.astype(jnp.float32), (0, Op - O)).reshape(1, Op)
    return dict(table=table_p, w=w1_p, b=b1_p, D=D, O=O, Dp=Dp, Op=Op)


# ------------------------------- Forward wrapper ----------------------------- #
def sentence_embedding_forward(ids, params):
    """ids: [B, W] int32; params from prepare_params() -> [B, O] float32."""
    B, W = ids.shape
    Dp, Op, O = params["Dp"], params["Op"], params["O"]

    # ---- tile / grid choices -------------------------------------------------
    tb = min(64, max(8, _round_up(B, 8)))        # batch tile: sublane-dense out,
    Bp = _round_up(B, tb)                        #   M = tb*W rows on the MXU
    n_b = Bp // tb
    # Keep >= 2 parallel grid steps when the batch grid degenerates (so v7x's
    # two TensorCores both get work); otherwise hold W1/bias fully VMEM-resident
    # in a single output tile (no redundant weight re-streaming).
    if n_b >= 2 or Op % 256 != 0:
        tn = Op
    else:
        tn = Op // 2
    n_o = Op // tn

    # ---- activations (only per-call data movement) ---------------------------
    # Pad ids with token 0 so the gather directly produces the kernel's
    # (Bp*W, Dp) bf16 slab -- no pad/reshape passes over the gathered tensor.
    ids_p = jnp.pad(ids.astype(jnp.int32), ((0, Bp - B), (0, 0)))
    emb_flat = jnp.take(params["table"], ids_p.reshape(-1), axis=0)  # (Bp*W, Dp)
    # TODO(synk): fuse the gather into the kernel (scalar-prefetched ids in SMEM
    # + manual double-buffered DMA from an HBM-resident table) to remove this
    # (B, W, D) intermediate entirely.

    kernel = functools.partial(_sent_embd_kernel, words=W)

    out = pl.pallas_call(
        kernel,
        out_shape=jax.ShapeDtypeStruct((Bp, Op), jnp.float32),
        grid_spec=pltpu.PrefetchScalarGridSpec(
            num_scalar_prefetch=0,
            grid=(n_b, n_o),
            in_specs=[
                pl.BlockSpec((tb * W, Dp), lambda i, j: (i, 0)),   # emb row slab
                pl.BlockSpec((Dp, tn), lambda i, j: (0, j)),       # W1 (resident if n_o==1)
                pl.BlockSpec((1, tn), lambda i, j: (0, j)),        # bias tile
            ],
            out_specs=pl.BlockSpec((tb, tn), lambda i, j: (i, j)),
        ),
        compiler_params=pltpu.CompilerParams(
            dimension_semantics=("parallel", "parallel"),
        ),
    )(emb_flat, params["w"], params["b"])

    return out[:B, :O]


# ----------------------------- Tokenizer glue ------------------------------- #
def words_to_ids(sentences, word_to_token, max_words):
    """Mirrors _words_to_ids: regex split, dict lookup, zero-pad/truncate."""
    rows = []
    for sent in sentences:
        words = re.findall(r"[\w']+", str(sent).lower())
        toks = [word_to_token[w] for w in words if w in word_to_token]
        toks = toks[:max_words]
        toks = toks + [0] * (max_words - len(toks))
        rows.append(toks)
    return jnp.asarray(rows, dtype=jnp.int32)


# ----------------------------------- main ----------------------------------- #
if __name__ == "__main__":
    # Small synthetic hyperparameters (module defaults scaled down):
    num_embeddings = 100          # vocab size (incl. pad row 0)
    word_embedding_dim = 128      # D (module default 300)
    max_words = 16                # W (module default)
    output_dim = 256              # O (module default 2048)
    batch = 2

    # Deterministic parameter init (synthetic; no checkpoint loading).
    key = jax.random.PRNGKey(0)
    k_emb, k_w, k_b = jax.random.split(key, 3)
    emb_table = jax.random.normal(k_emb, (num_embeddings, word_embedding_dim),
                                  dtype=jnp.float32)
    emb_table = emb_table.at[0].set(0.0)   # pad token -> zero embedding row
    w1 = jax.random.normal(k_w, (word_embedding_dim, output_dim),
                           dtype=jnp.float32) * 0.02     # [D, O] = Linear.weight.T
    b1 = jax.random.normal(k_b, (output_dim,), dtype=jnp.float32) * 0.01

    # Tiny deterministic vocab (stands in for s3d_dict.npy); token 0 = pad.
    vocab = ["the", "cat", "sat", "on", "mat", "a", "dog", "ran",
             "fast", "and", "big", "small"]
    word_to_token = {w: i + 1 for i, w in enumerate(vocab)}

    sentences = ["The cat sat on the mat", "A big dog ran fast"]
    ids = words_to_ids(sentences, word_to_token, max_words)   # [B, W]

    # One-time parameter prep (hoisted out of the per-call path).
    params = prepare_params(emb_table, w1, b1)
    params = jax.tree_util.tree_map(
        lambda x: jax.block_until_ready(x) if isinstance(x, jax.Array) else x,
        params)

    out = sentence_embedding_forward(ids, params)
    out = jax.block_until_ready(out)

    # Reference check in plain JAX (f32); loosened tolerance for bf16 operands.
    emb_ref = jnp.take(emb_table, ids, axis=0)
    ref = jnp.max(jnp.maximum(jnp.einsum("bwd,do->bwo", emb_ref, w1) + b1, 0.0),
                  axis=1)
    assert out.shape == (batch, output_dim)
    assert jnp.allclose(out, ref, atol=1e-2, rtol=1e-2)

    print("KERNEL_OK")
</pallas_src>

<mosaic_0001>
module attributes {stable_mosaic.version = 11 : i64} {
  func.func @_sent_embd_kernel(%arg0: i32, %arg1: i32, %arg2: memref<128x128xbf16, #tpu.memory_space<vmem>>, %arg3: memref<128x128xbf16, #tpu.memory_space<vmem>>, %arg4: memref<1x128xf32, #tpu.memory_space<vmem>>, %arg5: memref<8x128xf32, #tpu.memory_space<vmem>>) attributes {dimension_semantics = [#tpu.dimension_semantics<parallel>, #tpu.dimension_semantics<parallel>], iteration_bounds = array<i64: 1, 2>, scalar_prefetch = 0 : i64, scratch_operands = 0 : i64, tpu.core_type = #tpu.core_type<tc>, window_params = [{transform_indices = @transform_0, window_bounds = array<i64: 128, 128>}, {transform_indices = @transform_1, window_bounds = array<i64: 128, 128>}, {transform_indices = @transform_2, window_bounds = array<i64: 1, 128>}, {transform_indices = @transform_3, window_bounds = array<i64: 8, 128>}]} {
    %c0 = arith.constant 0 : index
    %c0_0 = arith.constant 0 : index
    %0 = vector.load %arg2[%c0, %c0_0] : memref<128x128xbf16, #tpu.memory_space<vmem>>, vector<128x128xbf16>
    %c0_1 = arith.constant 0 : index
    %c0_2 = arith.constant 0 : index
    %1 = vector.load %arg3[%c0_1, %c0_2] : memref<128x128xbf16, #tpu.memory_space<vmem>>, vector<128x128xbf16>
    %cst = arith.constant dense<0.000000e+00> : vector<128x128xf32>
    %2 = tpu.matmul %0, %1, %cst {dimension_numbers = #tpu.dot_dimension_numbers<[1], [0], [0], [1], [0, 0, 1, 1], [], []>} : vector<128x128xbf16>, vector<128x128xbf16>, vector<128x128xf32> -> vector<128x128xf32>
    %3 = vector.shape_cast %2 : vector<128x128xf32> to vector<8x16x128xf32>
    %cst_3 = arith.constant dense<0xFF800000> : vector<8x128xf32>
    %4 = vector.multi_reduction <maximumf>, %3, %cst_3 [1] : vector<8x16x128xf32> to vector<8x128xf32>
    %c0_4 = arith.constant 0 : index
    %c0_5 = arith.constant 0 : index
    %5 = vector.load %arg4[%c0_4, %c0_5] : memref<1x128xf32, #tpu.memory_space<vmem>>, vector<1x128xf32>
    %6 = vector.broadcast %5 : vector<1x128xf32> to vector<8x128xf32>
    %7 = arith.addf %4, %6 : vector<8x128xf32>
    %cst_6 = arith.constant 0.000000e+00 : f32
    %8 = vector.broadcast %cst_6 : f32 to vector<8x128xf32>
    %9 = arith.maximumf %7, %8 : vector<8x128xf32>
    %c0_7 = arith.constant 0 : index
    %c0_8 = arith.constant 0 : index
    %10 = vector.load %arg5[%c0_7, %c0_8] : memref<8x128xf32, #tpu.memory_space<vmem>>, vector<8x128xf32>
    tpu.vector_store %arg5[%c0_7, %c0_8], %9 {strides = array<i32>} : memref<8x128xf32, #tpu.memory_space<vmem>>, vector<8x128xf32>,
    return
  }
  func.func @transform_0(%arg0: i32, %arg1: i32) -> (i32, i32) {
    %c0_i32 = arith.constant 0 : i32
    %c0_i32_0 = arith.constant 0 : i32
    return %arg0, %c0_i32 : i32, i32
  }
  func.func @transform_1(%arg0: i32, %arg1: i32) -> (i32, i32) {
    %c0_i32 = arith.constant 0 : i32
    %c0_i32_0 = arith.constant 0 : i32
    return %c0_i32, %arg1 : i32, i32
  }
  func.func @transform_2(%arg0: i32, %arg1: i32) -> (i32, i32) {
    %c0_i32 = arith.constant 0 : i32
    %c0_i32_0 = arith.constant 0 : i32
    return %c0_i32, %arg1 : i32, i32
  }
  func.func @transform_3(%arg0: i32, %arg1: i32) -> (i32, i32) {
    %c0_i32 = arith.constant 0 : i32
    return %arg0, %arg1 : i32, i32
  }
}

</mosaic_0001>

<llo_original>
// kernel: tpu_custom_call.1
$region0: #{tpu_custom_call.1}
  #allocation0 [shape = 'u32[]', space=smem, size = 0x4, offset = 0x4, fixed_abs, tag = 'smem constant byte address 0x4 - core index']
  #allocation1 [shape = 'u32[144,128]{1,0:T(1,128)}', space=vmem, size = 0x12000, scoped, tag = 'internal scratch']
  %s0 = inlined_call_operand.hbm [shape: bf16[128,128], index: 0, kind: input, shape index: {}]
  %s1 = inlined_call_operand.hbm [shape: bf16[128,256], index: 1, kind: input, shape index: {}]
  %s2 = inlined_call_operand.vmem [shape: f32[1,256], index: 2, kind: input, shape index: {}]
  %s3 = inlined_call_operand.hbm [shape: f32[8,256], index: 3, kind: output, shape index: {}]
  %s4 = sld [smem:[#allocation0]]
  $region53: #{tpu_custom_call.1} parent=0
    _
  %s6 = ssub.s32 1, %s4
  %s7 = scalar_select 0, %s6, %s4
  $region1: #{tpu_custom_call.1} parent=0
    #allocation2 [shape = 'u8[32768]{0}', space=vmem, size = 0x8000, scoped, tag = 'input window, operand 0, single buffered']
    #allocation3 [shape = 's32[2]{0}', space=sflag, size = 0x8, scoped, tag = 'scoped memory for tpu_custom_call.1']
    #allocation4 [shape = 's32[2]{0}', space=sflag, size = 0x8, scoped, tag = 'scoped memory for tpu_custom_call.1']
    #allocation5 [shape = 'u8[65536]{0}', space=vmem, size = 0x10000, scoped, tag = 'input window, operand 1']
    #allocation6 [shape = 's32[2]{0}', space=sflag, size = 0x8, scoped, tag = 'scoped memory for tpu_custom_call.1']
    #allocation7 [shape = 'u8[8192]{0}', space=vmem, size = 0x2000, scoped, tag = 'output window, operand 0']
    %8 = vsyncpa [#allocation3], 0
    %9 = vsyncpa [#allocation6], 0
    %s10 = scalar_lea.sflag [#allocation6], 1
    %11 = vsyncpa %s10, 0
    %12 = vsyncpa [#allocation4], 0
    %s13 = scalar_lea.sflag [#allocation4], 1
    %14 = vsyncpa %s13, 0
    loop: start=0, step=1, limit=4
    $region2: #{tpu_custom_call.1} parent=1 // loop_pre_header
      _
    $region3: #{tpu_custom_call.1} parent=1 // loop_header
      %s16 = sphi 0, %s20
      %p17 = scmp.ge.s32.totalorder %s16, 4
      %s23 = sphi 0, %s35
      %s24 = sphi 0, %s31
      %s25 = sphi 0, %s23
      %s26 = sphi 0, %s24
      %s27 = sphi 0, %s25
      %s28 = sphi 0, %s26
      %s38 = sphi 0, %s40
      %s41 = sphi 0, %s38
      %s42 = sphi 0, %s41
      %s58 = sphi 0, %s42
      %s64 = sphi 0, %s66
      %s67 = sphi 0, %s64
      %s68 = sphi 0, %s67
      %s84 = sphi 0, %s68
      %s90 = sphi 0, %s92
      %s93 = sphi 0, %s90
      %s94 = sphi 0, %s93
      %s110 = sphi 0, %s94
      %s118 = sphi 0, %s120
      %s121 = sphi 0, %s118
      %s122 = sphi 0, %s121
      %s138 = sphi 0, %s122
    $region4: #{tpu_custom_call.1} parent=1 // loop_header_branch
      %19 = sbr.rel (%p17) target = $region8
    $region5: #{tpu_custom_call.1} parent=1 // loop_body
      %s21 = ssub.s32 %s16, 1
      %s22 = ssub.s32 %s16, 2
      %s29 = sadd.s32 1, %s24
      %p30 = scmp.ge.s32.totalorder %s29, 2
      %s31 = scalar_select %p30, 0, %s29
      %s32 = sadd.s32 1, %s23
      %s33 = scalar_select %p30, %s32, %s23
      %p34 = scmp.ge.s32.totalorder %s33, 1
      %s35 = scalar_select %p34, 0, %s33
      %s36 = ssub.s32 %s23, %s35
      %p37 = scmp.eq.s32.totalorder %s36, 0
      %s39 = sadd.s32 %s38, 1
      %s40 = scalar_select %p37, %s38, %s39
      %p43 = pneg %p37
      %p44 = scmp.eq.s32.totalorder %s16, 1
      %p45 = por %p43, %p44
      %p46 = scmp.ne.s32.totalorder %s38, %s41
      %p47 = scmp.eq.s32.totalorder %s16, 0
      %p48 = por %p46, %p47
      %p49 = scmp.ne.s32.totalorder %s38, %s41
      %p50 = scmp.eq.s32.totalorder %s21, 1
      %p51 = por %p49, %p50
      %p52 = scmp.ne.s32.totalorder %s41, %s42
      %p53 = scmp.eq.s32.totalorder %s21, 0
      %p54 = por %p52, %p53
      %p55 = scmp.ne.s32.totalorder %s41, %s42
      %p56 = scmp.eq.s32.totalorder %s22, 1
      %p57 = por %p55, %p56
      %p59 = scmp.ne.s32.totalorder %s42, %s58
      %p60 = scmp.eq.s32.totalorder %s22, 0
      %p61 = por %p59, %p60
      %s62 = ssub.s32 %s24, %s31
      %p63 = scmp.eq.s32.totalorder %s62, 0
      %s65 = sadd.s32 %s64, 1
      %s66 = scalar_select %p63, %s64, %s65
      %p69 = pneg %p63
      %p70 = scmp.eq.s32.totalorder %s16, 1
      %p71 = por %p69, %p70
      %p72 = scmp.ne.s32.totalorder %s64, %s67
      %p73 = scmp.eq.s32.totalorder %s16, 0
      %p74 = por %p72, %p73
      %p75 = scmp.ne.s32.totalorder %s64, %s67
      %p76 = scmp.eq.s32.totalorder %s21, 1
      %p77 = por %p75, %p76
      %p78 = scmp.ne.s32.totalorder %s67, %s68
      %p79 = scmp.eq.s32.totalorder %s21, 0
      %p80 = por %p78, %p79
      %p81 = scmp.ne.s32.totalorder %s67, %s68
      %p82 = scmp.eq.s32.totalorder %s22, 1
      %p83 = por %p81, %p82
      %p85 = scmp.ne.s32.totalorder %s68, %s84
      %p86 = scmp.eq.s32.totalorder %s22, 0
      %p87 = por %p85, %p86
      %s88 = ssub.s32 %s24, %s31
      %p89 = scmp.eq.s32.totalorder %s88, 0
      %s91 = sadd.s32 %s90, 1
      %s92 = scalar_select %p89, %s90, %s91
      %p95 = pneg %p89
      %p96 = scmp.eq.s32.totalorder %s16, 1
      %p97 = por %p95, %p96
      %p98 = scmp.ne.s32.totalorder %s90, %s93
      %p99 = scmp.eq.s32.totalorder %s16, 0
      %p100 = por %p98, %p99
      %p101 = scmp.ne.s32.totalorder %s90, %s93
      %p102 = scmp.eq.s32.totalorder %s21, 1
      %p103 = por %p101, %p102
      %p104 = scmp.ne.s32.totalorder %s93, %s94
      %p105 = scmp.eq.s32.totalorder %s21, 0
      %p106 = por %p104, %p105
      %p107 = scmp.ne.s32.totalorder %s93, %s94
      %p108 = scmp.eq.s32.totalorder %s22, 1
      %p109 = por %p107, %p108
      %p111 = scmp.ne.s32.totalorder %s94, %s110
      %p112 = scmp.eq.s32.totalorder %s22, 0
      %p113 = por %p111, %p112
      %s114 = ssub.s32 %s23, %s35
      %s115 = ssub.s32 %s24, %s31
      %s116 = sor.u32 %s114, %s115
      %p117 = scmp.eq.s32.totalorder %s116, 0
      %s119 = sadd.s32 %s118, 1
      %s120 = scalar_select %p117, %s118, %s119
      %p123 = pneg %p117
      %p124 = scmp.eq.s32.totalorder %s16, 1
      %p125 = por %p123, %p124
      %p126 = scmp.ne.s32.totalorder %s118, %s121
      %p127 = scmp.eq.s32.totalorder %s16, 0
      %p128 = por %p126, %p127
      %p129 = scmp.ne.s32.totalorder %s118, %s121
      %p130 = scmp.eq.s32.totalorder %s21, 1
      %p131 = por %p129, %p130
      %p132 = scmp.ne.s32.totalorder %s121, %s122
      %p133 = scmp.eq.s32.totalorder %s21, 0
      %p134 = por %p132, %p133
      %p135 = scmp.ne.s32.totalorder %s121, %s122
      %p136 = scmp.eq.s32.totalorder %s22, 1
      %p137 = por %p135, %p136
      %p139 = scmp.ne.s32.totalorder %s122, %s138
      %p140 = scmp.eq.s32.totalorder %s22, 0
      %p141 = por %p139, %p140
      %p142 = scmp.le.s32.totalorder 1, %s16
      %p143 = scmp.lt.s32.totalorder %s16, 3
      %p144 = pnand %p142, %p143
      %p145 = pneg %p144
      // Predicated region
      $region9: #{tpu_custom_call.1} parent=5 // pred_check
        _
      $region10: #{tpu_custom_call.1} parent=5 // pred_check_branch
        %147 = sbr.rel (%p144) target = $region12
      $region11: #{tpu_custom_call.1} parent=5 // pred_region
        %s148 = ssub.s32 %s16, 1
        // Predicated region
        $region13: #{tpu_custom_call.1} parent=11 // pred_check
          %p149 = pneg %p54
        $region14: #{tpu_custom_call.1} parent=11 // pred_check_branch
          %151 = sbr.rel (%p149) target = $region16
        $region15: #{tpu_custom_call.1} parent=11 // pred_region
          %s152 = smul.u32 16, %s25
          %s154 = ssub.s32 1024, 1024
          %155 = vsyncadd [#allocation3], %s154
          %s156 = smul.addr %s152, 64
          %s157 = scalar_lea.hbm %s0, %s156
          %s158 = sshll.u32 [#allocation2], 4
          %s159 = int_to_ptr.vmem [resolvable:$true] %s158
          %164 = dma.hbm_to_vmem [thread:$0]  %s157, 1024, %s159, [#allocation3], 64, 64, 4
        $region16: #{tpu_custom_call.1} parent=11 // pred_fallthru
          _
      $region12: #{tpu_custom_call.1} parent=5 // pred_fallthru
        _
      %p165 = scmp.lt.s32.totalorder %s16, 2
      // Predicated region
      $region17: #{tpu_custom_call.1} parent=5 // pred_check
        %p166 = pneg %p165
      $region18: #{tpu_custom_call.1} parent=5 // pred_check_branch
        %168 = sbr.rel (%p166) target = $region20
      $region19: #{tpu_custom_call.1} parent=5 // pred_region
        // Predicated region
        $region21: #{tpu_custom_call.1} parent=19 // pred_check
          %p169 = pneg %p74
        $region22: #{tpu_custom_call.1} parent=19 // pred_check_branch
          %171 = sbr.rel (%p169) target = $region24
        $region23: #{tpu_custom_call.1} parent=19 // pred_region
          %s172 = sand.u32 %s64, 1
          %s173 = scalar_lea.sflag [#allocation6], %s172
          %s174 = sand.u32 %s64, 1
          %s175 = smul.addr %s174, 64
          %s176 = scalar_lea.vmem [#allocation5], %s175
          %s178 = ssub.s32 1024, 1024
          %179 = vsyncadd %s173, %s178
          %s180 = smul.addr %s24, 64
          %s181 = scalar_lea.hbm %s1, %s180
          %s182 = sshll.u32 %s176, 4
          %s183 = int_to_ptr.vmem [resolvable:$true] %s182
          %188 = dma.hbm_to_vmem [thread:$0]  %s181, 1024, %s183, %s173, 128, 64, 4
        $region24: #{tpu_custom_call.1} parent=19 // pred_fallthru
          _
        // Predicated region
        $region25: #{tpu_custom_call.1} parent=19 // pred_check
          %p189 = pneg %p100
        $region26: #{tpu_custom_call.1} parent=19 // pred_check_branch
          %191 = sbr.rel (%p189) target = $region28
        $region27: #{tpu_custom_call.1} parent=19 // pred_region
          %p192 = scmp.lt.s32.totalorder %s24, 1
          %s193 = scalar_select %p192, %s24, 1
          %s194 = scalar_lea.vmem %s2, %s193
        $region28: #{tpu_custom_call.1} parent=19 // pred_fallthru
          _
      $region20: #{tpu_custom_call.1} parent=5 // pred_fallthru
        _
      %p195 = scmp.le.s32.totalorder 1, %s16
      %p196 = scmp.lt.s32.totalorder %s16, 3
      %p197 = pnand %p195, %p196
      %p198 = pneg %p197
      // Predicated region
      $region29: #{tpu_custom_call.1} parent=5 // pred_check
        _
      $region30: #{tpu_custom_call.1} parent=5 // pred_check_branch
        %200 = sbr.rel (%p197) target = $region32
      $region31: #{tpu_custom_call.1} parent=5 // pred_region
        %s201 = ssub.s32 %s16, 1
        // Predicated region
        $region33: #{tpu_custom_call.1} parent=31 // pred_check
          %p202 = pneg %p54
        $region34: #{tpu_custom_call.1} parent=31 // pred_check_branch
          %204 = sbr.rel (%p202) target = $region36
        $region35: #{tpu_custom_call.1} parent=31 // pred_region
          %205 = dma.done [#allocation3], 1024
        $region36: #{tpu_custom_call.1} parent=31 // pred_fallthru
          _
        %s206 = sand.u32 %s67, 1
        %s207 = scalar_lea.sflag [#allocation6], %s206
        %s208 = sand.u32 %s67, 1
        %s209 = smul.addr %s208, 64
        %s210 = scalar_lea.vmem [#allocation5], %s209
        // Predicated region
        $region37: #{tpu_custom_call.1} parent=31 // pred_check
          %p211 = pneg %p80
        $region38: #{tpu_custom_call.1} parent=31 // pred_check_branch
          %213 = sbr.rel (%p211) target = $region40
        $region39: #{tpu_custom_call.1} parent=31 // pred_region
          %214 = dma.done %s207, 1024
        $region40: #{tpu_custom_call.1} parent=31 // pred_fallthru
          _
        %p215 = pneg %p54
        %p216 = pneg %p51
        %s217 = sand.u32 %s67, 1
        %s218 = scalar_lea.sflag [#allocation6], %s217
        %s219 = sand.u32 %s67, 1
        %s220 = smul.addr %s219, 64
        %s221 = scalar_lea.vmem [#allocation5], %s220
        %p222 = pneg %p80
        %p223 = pneg %p77
        %p224 = scmp.lt.s32.totalorder %s26, 1
        %s225 = scalar_select %p224, %s26, 1
        %s226 = scalar_lea.vmem %s2, %s225
        %p227 = pneg %p106
        %p228 = pneg %p103
        %p229 = pneg %p134
        %p230 = pneg %p131
        %s231 = sand.u32 %s121, 1
        %s232 = scalar_lea.sflag [#allocation4], %s231
        %s233 = sand.u32 %s121, 1
        %s234 = smul.addr %s233, 8
        %s235 = scalar_lea.vmem [#allocation7], %s234
        %s236 = smul.u32 16, %s25
        %p237 = scmp.lt.s32.totalorder %s26, 1
        %s238 = scalar_select %p237, %s26, 1
        %s239 = scalar_lea.vmem %s2, %s238
        %v241 = vld [vmem:[#allocation2] sm:$0xf]
        %v242 = vld [vmem:[#allocation2 + $0x4] sm:$0xf]
        %v243 = vld [vmem:[#allocation2 + $0x8] sm:$0xf]
        %v244 = vld [vmem:[#allocation2 + $0xc] sm:$0xf]
        %v245 = vld [vmem:[#allocation2 + $0x10] sm:$0xf]
        %v246 = vld [vmem:[#allocation2 + $0x14] sm:$0xf]
        %v247 = vld [vmem:[#allocation2 + $0x18] sm:$0xf]
        %v248 = vld [vmem:[#allocation2 + $0x1c] sm:$0xf]
        %v249 = vld [vmem:[#allocation2 + $0x20] sm:$0xf]
        %v250 = vld [vmem:[#allocation2 + $0x24] sm:$0xf]
        %v251 = vld [vmem:[#allocation2 + $0x28] sm:$0xf]
        %v252 = vld [vmem:[#allocation2 + $0x2c] sm:$0xf]
        %v253 = vld [vmem:[#allocation2 + $0x30] sm:$0xf]
        %v254 = vld [vmem:[#allocation2 + $0x34] sm:$0xf]
        %v255 = vld [vmem:[#allocation2 + $0x38] sm:$0xf]
        %v256 = vld [vmem:[#allocation2 + $0x3c] sm:$0xf]
        %v257 = vld [vmem:[%s210] sm:$0xf]
        %v258 = vld [vmem:[%s210 + $0x4] sm:$0xf]
        %v259 = vld [vmem:[%s210 + $0x8] sm:$0xf]
        %v260 = vld [vmem:[%s210 + $0xc] sm:$0xf]
        %v261 = vld [vmem:[%s210 + $0x10] sm:$0xf]
        %v262 = vld [vmem:[%s210 + $0x14] sm:$0xf]
        %v263 = vld [vmem:[%s210 + $0x18] sm:$0xf]
        %v264 = vld [vmem:[%s210 + $0x1c] sm:$0xf]
        %v265 = vld [vmem:[%s210 + $0x20] sm:$0xf]
        %v266 = vld [vmem:[%s210 + $0x24] sm:$0xf]
        %v267 = vld [vmem:[%s210 + $0x28] sm:$0xf]
        %v268 = vld [vmem:[%s210 + $0x2c] sm:$0xf]
        %v269 = vld [vmem:[%s210 + $0x30] sm:$0xf]
        %v270 = vld [vmem:[%s210 + $0x34] sm:$0xf]
        %v271 = vld [vmem:[%s210 + $0x38] sm:$0xf]
        %v272 = vld [vmem:[%s210 + $0x3c] sm:$0xf]
        %v289 = vunpack.c.l.b16 %v241
        %v290 = vunpack.c.l.b16 %v242
        %v291 = vunpack.c.l.b16 %v243
        %v292 = vunpack.c.l.b16 %v244
        %v293 = vunpack.c.l.b16 %v245
        %v294 = vunpack.c.l.b16 %v246
        %v295 = vunpack.c.l.b16 %v247
        %v296 = vunpack.c.l.b16 %v248
        %v297 = vunpack.c.l.b16 %v249
        %v298 = vunpack.c.l.b16 %v250
        %v299 = vunpack.c.l.b16 %v251
        %v300 = vunpack.c.l.b16 %v252
        %v301 = vunpack.c.l.b16 %v253
        %v302 = vunpack.c.l.b16 %v254
        %v303 = vunpack.c.l.b16 %v255
        %v304 = vunpack.c.l.b16 %v256
        %v305 = vpack.c.b16 %v290, %v289
        %v306 = vpack.c.b16 %v292, %v291
        %v307 = vpack.c.b16 %v294, %v293
        %v308 = vpack.c.b16 %v296, %v295
        %v309 = vpack.c.b16 %v298, %v297
        %v310 = vpack.c.b16 %v300, %v299
        %v311 = vpack.c.b16 %v302, %v301
        %v312 = vpack.c.b16 %v304, %v303
        %v337 = vunpack.c.l.b16 %v257
        %v338 = vunpack.c.l.b16 %v258
        %v339 = vunpack.c.l.b16 %v259
        %v340 = vunpack.c.l.b16 %v260
        %v341 = vunpack.c.l.b16 %v261
        %v342 = vunpack.c.l.b16 %v262
        %v343 = vunpack.c.l.b16 %v263
        %v344 = vunpack.c.l.b16 %v264
        %v345 = vunpack.c.l.b16 %v265
        %v346 = vunpack.c.l.b16 %v266
        %v347 = vunpack.c.l.b16 %v267
        %v348 = vunpack.c.l.b16 %v268
        %v349 = vunpack.c.l.b16 %v269
        %v350 = vunpack.c.l.b16 %v270
        %v351 = vunpack.c.l.b16 %v271
        %v352 = vunpack.c.l.b16 %v272
        %v353 = vpack.c.b16 %v338, %v337
        %v354 = vpack.c.b16 %v340, %v339
        %v355 = vpack.c.b16 %v342, %v341
        %v356 = vpack.c.b16 %v344, %v343
        %v357 = vpack.c.b16 %v346, %v345
        %v358 = vpack.c.b16 %v348, %v347
        %v359 = vpack.c.b16 %v350, %v349
        %v360 = vpack.c.b16 %v352, %v351
        %369 = vmatprep.subr.bf16.mxu0 0
        %370 = vmatpush1.bf16.msra.mxu0 %v353
        %371 = vmatprep.subr.bf16.mxu0 0
        %372 = vmatpush1.bf16.msra.mxu0 %v354
        %373 = vmatprep.subr.bf16.mxu0 0
        %374 = vmatpush1.bf16.msra.mxu0 %v355
        %375 = vmatprep.subr.bf16.mxu0 0
        %376 = vmatpush1.bf16.msra.mxu0 %v356
        %377 = vmatprep.subr.bf16.mxu0 0
        %378 = vmatpush1.bf16.msra.mxu0 %v357
        %379 = vmatprep.subr.bf16.mxu0 0
        %380 = vmatpush1.bf16.msra.mxu0 %v358
        %381 = vmatprep.subr.bf16.mxu0 0
        %382 = vmatpush1.bf16.msra.mxu0 %v359
        %383 = vmatprep.subr.bf16.mxu0 0
        %384 = vmatpush1.bf16.msra.mxu0 %v360
        %385 = vmatprep.subr.bf16.mxu0 0
        %386 = vmatpush1.bf16.msra.mxu0 0
        %387 = vmatprep.subr.bf16.mxu0 0
        %388 = vmatpush1.bf16.msra.mxu0 0
        %389 = vmatprep.subr.bf16.mxu0 0
        %390 = vmatpush1.bf16.msra.mxu0 0
        %391 = vmatprep.subr.bf16.mxu0 0
        %392 = vmatpush1.bf16.msra.mxu0 0
        %393 = vmatprep.subr.bf16.mxu0 0
        %394 = vmatpush1.bf16.msra.mxu0 0
        %395 = vmatprep.subr.bf16.mxu0 0
        %396 = vmatpush1.bf16.msra.mxu0 0
        %397 = vmatprep.subr.bf16.mxu0 0
        %398 = vmatpush1.bf16.msra.mxu0 0
        %399 = vmatprep.subr.bf16.mxu0 0
        %400 = vmatpush1.bf16.msra.mxu0 0
        %401 = vmatprep.mubr.bf16.mxu0 0
        %402 = vmatmul.mubr.bf16.gmra.mrb[0].mxu0 %v305
        %v403 = vpop.f32.mrb[0].mxu0
        %v404 = vadd.f32 0.0, %v403
        %v405 = vpop.f32.mrb[0].mxu0
        %v406 = vpop.f32.mrb[0].mxu0
        %v407 = vadd.f32 0.0, %v406
        %v408 = vpop.f32.mrb[0].mxu0
        %409 = vmatprep.mubr.bf16.mxu0 0
        %410 = vmatmul.mubr.bf16.gmra.mrb[0].mxu0 %v306
        %v411 = vpop.f32.mrb[0].mxu0
        %v412 = vadd.f32 0.0, %v411
        %v413 = vpop.f32.mrb[0].mxu0
        %v414 = vpop.f32.mrb[0].mxu0
        %v415 = vadd.f32 0.0, %v414
        %v416 = vpop.f32.mrb[0].mxu0
        %417 = vmatprep.mubr.bf16.mxu0 0
        %418 = vmatmul.mubr.bf16.gmra.mrb[0].mxu0 %v307
        %v419 = vpop.f32.mrb[0].mxu0
        %v420 = vadd.f32 0.0, %v419
        %v421 = vpop.f32.mrb[0].mxu0
        %v422 = vpop.f32.mrb[0].mxu0
        %v423 = vadd.f32 0.0, %v422
        %v424 = vpop.f32.mrb[0].mxu0
        %425 = vmatprep.mubr.bf16.mxu0 0
        %426 = vmatmul.mubr.bf16.gmra.mrb[0].mxu0 %v308
        %v427 = vpop.f32.mrb[0].mxu0
        %v428 = vadd.f32 0.0, %v427
        %v429 = vpop.f32.mrb[0].mxu0
        %v430 = vpop.f32.mrb[0].mxu0
        %v431 = vadd.f32 0.0, %v430
        %v432 = vpop.f32.mrb[0].mxu0
        %433 = vmatprep.mubr.bf16.mxu0 0
        %434 = vmatmul.mubr.bf16.gmra.mrb[0].mxu0 %v309
        %v435 = vpop.f32.mrb[0].mxu0
        %v436 = vadd.f32 0.0, %v435
        %v437 = vpop.f32.mrb[0].mxu0
        %v438 = vpop.f32.mrb[0].mxu0
        %v439 = vadd.f32 0.0, %v438
        %v440 = vpop.f32.mrb[0].mxu0
        %441 = vmatprep.mubr.bf16.mxu0 0
        %442 = vmatmul.mubr.bf16.gmra.mrb[0].mxu0 %v310
        %v443 = vpop.f32.mrb[0].mxu0
        %v444 = vadd.f32 0.0, %v443
        %v445 = vpop.f32.mrb[0].mxu0
        %v446 = vpop.f32.mrb[0].mxu0
        %v447 = vadd.f32 0.0, %v446
        %v448 = vpop.f32.mrb[0].mxu0
        %449 = vmatprep.mubr.bf16.mxu0 0
        %450 = vmatmul.mubr.bf16.gmra.mrb[0].mxu0 %v311
        %v451 = vpop.f32.mrb[0].mxu0
        %v452 = vadd.f32 0.0, %v451
        %v453 = vpop.f32.mrb[0].mxu0
        %v454 = vpop.f32.mrb[0].mxu0
        %v455 = vadd.f32 0.0, %v454
        %v456 = vpop.f32.mrb[0].mxu0
        %457 = vmatprep.mubr.bf16.mxu0 0
        %458 = vmatmul.mubr.bf16.gmra.mrb[0].mxu0 %v312
        %v459 = vpop.f32.mrb[0].mxu0
        %v460 = vadd.f32 0.0, %v459
        %v461 = vpop.f32.mrb[0].mxu0
        %v462 = vpop.f32.mrb[0].mxu0
        %v463 = vadd.f32 0.0, %v462
        %v464 = vpop.f32.mrb[0].mxu0
        %465 = vdwg.mxu0
        %v466 = vmax.f32 %v404, %v407
        %v467 = vrot.slane %v466, 4
        %v468 = vmax.f32 %v466, %v467
        %v469 = vrot.slane %v468, 2
        %v470 = vmax.f32 %v468, %v469
        %v471 = vrot.slane %v470, 1
        %v472 = vmax.f32 %v470, %v471
        %v473 = vmax.f32 %v412, %v415
        %v474 = vrot.slane %v473, 4
        %v475 = vmax.f32 %v473, %v474
        %v476 = vrot.slane %v475, 2
        %v477 = vmax.f32 %v475, %v476
        %v478 = vrot.slane %v477, 1
        %v479 = vmax.f32 %v477, %v478
        %v480 = vmax.f32 %v420, %v423
        %v481 = vrot.slane %v480, 4
        %v482 = vmax.f32 %v480, %v481
        %v483 = vrot.slane %v482, 2
        %v484 = vmax.f32 %v482, %v483
        %v485 = vrot.slane %v484, 1
        %v486 = vmax.f32 %v484, %v485
        %v487 = vmax.f32 %v428, %v431
        %v488 = vrot.slane %v487, 4
        %v489 = vmax.f32 %v487, %v488
        %v490 = vrot.slane %v489, 2
        %v491 = vmax.f32 %v489, %v490
        %v492 = vrot.slane %v491, 1
        %v493 = vmax.f32 %v491, %v492
        %v494 = vmax.f32 %v436, %v439
        %v495 = vrot.slane %v494, 4
        %v496 = vmax.f32 %v494, %v495
        %v497 = vrot.slane %v496, 2
        %v498 = vmax.f32 %v496, %v497
        %v499 = vrot.slane %v498, 1
        %v500 = vmax.f32 %v498, %v499
        %v501 = vmax.f32 %v444, %v447
        %v502 = vrot.slane %v501, 4
        %v503 = vmax.f32 %v501, %v502
        %v504 = vrot.slane %v503, 2
        %v505 = vmax.f32 %v503, %v504
        %v506 = vrot.slane %v505, 1
        %v507 = vmax.f32 %v505, %v506
        %v508 = vmax.f32 %v452, %v455
        %v509 = vrot.slane %v508, 4
        %v510 = vmax.f32 %v508, %v509
        %v511 = vrot.slane %v510, 2
        %v512 = vmax.f32 %v510, %v511
        %v513 = vrot.slane %v512, 1
        %v514 = vmax.f32 %v512, %v513
        %v515 = vmax.f32 %v460, %v463
        %v516 = vrot.slane %v515, 4
        %v517 = vmax.f32 %v515, %v516
        %v518 = vrot.slane %v517, 2
        %v519 = vmax.f32 %v517, %v518
        %v520 = vrot.slane %v519, 1
        %v521 = vmax.f32 %v519, %v520
        %v522 = vld [vmem:[%s239] sm:$0x1]
        %v524 = vlaneseq
        %v525 = vshrl.u32 %v524, 7
        %v526 = vsub.s32 0, %v525
        %v527 = vrot.slane %v522, %v526
        %v529 = vadd.f32 %v472, %v527
        %v530 = vadd.f32 %v479, %v527
        %v531 = vadd.f32 %v486, %v527
        %v532 = vadd.f32 %v493, %v527
        %v533 = vadd.f32 %v500, %v527
        %v534 = vadd.f32 %v507, %v527
        %v535 = vadd.f32 %v514, %v527
        %v536 = vadd.f32 %v521, %v527
        %v537 = vmax.f32 %v529, 0.0
        %v538 = vmax.f32 %v530, 0.0
        %v539 = vmax.f32 %v531, 0.0
        %v540 = vmax.f32 %v532, 0.0
        %v541 = vmax.f32 %v533, 0.0
        %v542 = vmax.f32 %v534, 0.0
        %v543 = vmax.f32 %v535, 0.0
        %v544 = vmax.f32 %v536, 0.0
        %v553 = vrot.slane %v538, 7
        %vm554 = vcmask 1041409
        %v555 = vsel %vm554, %v553, %v537
        %v556 = vrot.slane %v539, 6
        %vm557 = vcmask 1042434
        %v558 = vsel %vm557, %v556, %v555
        %v559 = vrot.slane %v540, 5
        %vm560 = vcmask 1043459
        %v561 = vsel %vm560, %v559, %v558
        %v562 = vrot.slane %v541, 4
        %vm563 = vcmask 1044484
        %v564 = vsel %vm563, %v562, %v561
        %v565 = vrot.slane %v542, 3
        %vm566 = vcmask 1045509
        %v567 = vsel %vm566, %v565, %v564
        %v568 = vrot.slane %v543, 2
        %vm569 = vcmask 1046534
        %v570 = vsel %vm569, %v568, %v567
        %v571 = vrot.slane %v544, 1
        %vm572 = vcmask 1047559
        %v573 = vsel %vm572, %v571, %v570
        %575 = vst [vmem:[%s235] sm:$0xff] %v573
        %s576 = sand.u32 %s121, 1
        %s577 = scalar_lea.sflag [#allocation4], %s576
        %s578 = sand.u32 %s121, 1
        %s579 = smul.addr %s578, 8
        %s580 = scalar_lea.vmem [#allocation7], %s579
        // Predicated region
        $region41: #{tpu_custom_call.1} parent=31 // pred_check
          %p581 = pneg %p131
        $region42: #{tpu_custom_call.1} parent=31 // pred_check_branch
          %583 = sbr.rel (%p581) target = $region44
        $region43: #{tpu_custom_call.1} parent=31 // pred_region
          %s585 = ssub.s32 128, 128
          %586 = vsyncadd %s577, %s585
          %s587 = smul.addr %s25, 2
          %s588 = sadd.s32 %s26, %s587
          %s589 = smul.addr %s588, 128
          %s590 = scalar_lea.hbm %s3, %s589
          %s592 = sshll.u32 %s580, 4
          %s593 = int_to_ptr.vmem [resolvable:$true] %s592
          %595 = dma.vmem_to_hbm [thread:$0]  %s593, 128, %s590, %s577
        $region44: #{tpu_custom_call.1} parent=31 // pred_fallthru
          _
      $region32: #{tpu_custom_call.1} parent=5 // pred_fallthru
        _
      %p596 = scmp.le.s32.totalorder 2, %s16
      // Predicated region
      $region45: #{tpu_custom_call.1} parent=5 // pred_check
        %p597 = pneg %p596
      $region46: #{tpu_custom_call.1} parent=5 // pred_check_branch
        %599 = sbr.rel (%p597) target = $region48
      $region47: #{tpu_custom_call.1} parent=5 // pred_region
        %s600 = ssub.s32 %s16, 2
        // Predicated region
        $region49: #{tpu_custom_call.1} parent=47 // pred_check
          %p601 = pneg %p137
        $region50: #{tpu_custom_call.1} parent=47 // pred_check_branch
          %603 = sbr.rel (%p601) target = $region52
        $region51: #{tpu_custom_call.1} parent=47 // pred_region
          %s604 = sand.u32 %s122, 1
          %s605 = scalar_lea.sflag [#allocation4], %s604
          %s606 = sand.u32 %s122, 1
          %s607 = smul.addr %s606, 8
          %s608 = scalar_lea.vmem [#allocation7], %s607
          %609 = dma.done %s605, 128
        $region52: #{tpu_custom_call.1} parent=47 // pred_fallthru
          _
      $region48: #{tpu_custom_call.1} parent=5 // pred_fallthru
        _
    $region6: #{tpu_custom_call.1} parent=1 // loop_footer
      %s20 = sadd.s32 1, %s16
    $region7: #{tpu_custom_call.1} parent=1 // loop_footer_branch
      %15 = sbr.rel target = $region3
    $region8: #{tpu_custom_call.1} parent=1 // loop_exit
      _
    %610 = vsyncpa [#allocation3], 1
    %s611 = scalar_lea.sflag [#allocation3], 1
    %612 = vsyncpa %s611, 1
    %613 = vsyncpa [#allocation6], 1
    %s614 = scalar_lea.sflag [#allocation6], 1
    %615 = vsyncpa %s614, 1
    %616 = vsyncpa [#allocation4], 1
    %s617 = scalar_lea.sflag [#allocation4], 1
    %618 = vsyncpa %s617, 1

</llo_original>
